<compile_context>
chip_gen: v5e
topology: v5e:2x2
jax: 0.10.0
libtpu: 0.0.40
codegen_flags: <defaults>
</compile_context>

<pallas_src>
import functools

import jax
import jax.numpy as jnp
from jax.experimental import pallas as pl
from jax.experimental.pallas import tpu as pltpu

T5_OUTPUT_DIM = 1024
HIDDEN = 25


def _round_up(x, m):
    return ((x + m - 1) // m) * m


def judge_text_kernel(x_ref, w1t_ref, b1_ref, w2_ref, b2_ref, o_ref):
    # x_ref:   (tm, D)     batch tile (batch on sublanes), f32 or bf16
    # w1t_ref: (H, D)      transposed layer-1 weight (resident across the grid)
    # b1_ref:  (H, 1)      layer-1 bias column (f32, broadcasts over lanes)
    # w2_ref:  (H, 1)      layer-2 weight column (f32)
    # b2_ref:  (1,) SMEM   layer-2 bias scalar (f32)
    # o_ref:   (1, tm)     lane-dense output row (batch on lanes), f32
    x = x_ref[...]

    # Layer 1 on the MXU, "NT" form (contract last dim of both operands):
    #   h[H, tm] = W1^T @ x^T     -- same dimension_numbers as flash-attn q@k^T,
    # so Mosaic drives the MXU directly; no XLU transpose of the big x tile.
    h = jax.lax.dot_general(
        w1t_ref[...], x,
        dimension_numbers=(((1,), (1,)), ((), ())),
        preferred_element_type=jnp.float32,
    )
    h = jax.nn.sigmoid(h + b1_ref[...])                               # (H, tm) f32

    # Layer 2 on VPU + XLU: weighted sum over the tiny hidden axis (sublanes).
    y = jnp.sum(h * w2_ref[...], axis=0, keepdims=True) + b2_ref[0]   # (1, tm)
    o_ref[...] = jax.nn.sigmoid(y).astype(o_ref.dtype)


def prepare_judge_text_params(w1, b1, w2, b2, *, compute_dtype=jnp.float32):
    """One-time weight prep (hoisted out of the per-call path).

    w1: (D, H);  b1: (H,);  w2: (H, 1);  b2: (1,)
    compute_dtype: dtype x will be streamed in (f32 or bf16); the layer-1
    weight is stored in that dtype, all accumulation / post-matmul math is f32.
    """
    w1 = jnp.asarray(w1)
    D, H = w1.shape
    w1t = jnp.transpose(w1).astype(compute_dtype)          # (H, D): pads only sublanes
    b1c = jnp.asarray(b1, jnp.float32).reshape(H, 1)
    w2c = jnp.asarray(w2, jnp.float32).reshape(H, 1)
    b2s = jnp.asarray(b2, jnp.float32).reshape(1)
    return (w1t, b1c, w2c, b2s)


def judge_text_apply(params, x, *, tm=2048):
    """sigmoid(sigmoid(x @ w1 + b1) @ w2 + b2) -> (B, 1), single HBM pass over x."""
    w1t, b1c, w2c, b2s = params
    H, D = w1t.shape
    B, Dx = x.shape
    assert Dx == D
    assert x.dtype == w1t.dtype, "stream x in the dtype the params were prepared for"

    # Lane-aligned batch tile, clamped so tiny batches stay one 128-row tile.
    tm_eff = max(128, min(_round_up(tm, 128), _round_up(B, 128)))
    grid = (pl.cdiv(B, tm_eff),)          # ragged edge handled by Pallas masking

    # Explicit scoped-VMEM budget: double-buffered x tile + weights + headroom.
    x_tile_bytes = tm_eff * D * x.dtype.itemsize
    vmem_limit = int(min(96 << 20, max(32 << 20, 2 * x_tile_bytes + (4 << 20))))

    # Advisory cost: this head is pure x-streaming; tell XLA so it can overlap.
    bytes_accessed = (
        B * D * x.dtype.itemsize
        + w1t.size * w1t.dtype.itemsize
        + (b1c.size + w2c.size + b2s.size + B) * 4
    )
    cost = pl.CostEstimate(
        flops=2 * B * D * H + 2 * B * H,
        transcendentals=B * (H + 1),
        bytes_accessed=int(bytes_accessed),
    )

    out_row = pl.pallas_call(
        judge_text_kernel,
        out_shape=jax.ShapeDtypeStruct((1, B), jnp.float32),
        grid=grid,
        in_specs=[
            pl.BlockSpec((tm_eff, D), lambda i: (i, 0)),        # x tile (streamed)
            pl.BlockSpec((H, D), lambda i: (0, 0)),             # W1^T (resident)
            pl.BlockSpec((H, 1), lambda i: (0, 0)),             # b1 column
            pl.BlockSpec((H, 1), lambda i: (0, 0)),             # w2 column
            pl.BlockSpec(memory_space=pltpu.MemorySpace.SMEM),  # b2 scalar
        ],
        out_specs=pl.BlockSpec((1, tm_eff), lambda i: (0, i)),  # lane-dense row
        compiler_params=pltpu.CompilerParams(
            dimension_semantics=("parallel",),   # batch axis is embarrassingly parallel
            vmem_limit_bytes=vmem_limit,
        ),
        cost_estimate=cost,
    )(x, w1t, b1c, w2c, b2s)

    return out_row.reshape(B, 1)


def judge_text(x, w1, b1, w2, b2, *, tm=2048):
    """Convenience one-shot wrapper (prep + apply). Prefer prepare+apply in loops."""
    params = prepare_judge_text_params(w1, b1, w2, b2, compute_dtype=x.dtype)
    return judge_text_apply(params, x, tm=tm)


def judge_text_ref(x, w1, b1, w2, b2):
    h = jax.nn.sigmoid(x @ w1 + b1)
    return jax.nn.sigmoid(h @ w2 + b2)


if __name__ == "__main__":
    key = jax.random.PRNGKey(0)
    k_x, k_w1, k_b1, k_w2, k_b2 = jax.random.split(key, 5)

    # Deterministic synthetic params (PyTorch nn.Linear-like uniform init).
    bound1 = 1.0 / jnp.sqrt(T5_OUTPUT_DIM)
    w1 = jax.random.uniform(k_w1, (T5_OUTPUT_DIM, HIDDEN), jnp.float32, -bound1, bound1)
    b1 = jax.random.uniform(k_b1, (HIDDEN,), jnp.float32, -bound1, bound1)
    bound2 = 1.0 / jnp.sqrt(HIDDEN)
    w2 = jax.random.uniform(k_w2, (HIDDEN, 1), jnp.float32, -bound2, bound2)
    b2 = jax.random.uniform(k_b2, (1,), jnp.float32, -bound2, bound2)

    # f32 path: params prepared once, reused across batch sizes / tile sizes.
    params_f32 = prepare_judge_text_params(w1, b1, w2, b2, compute_dtype=jnp.float32)

    # Small batch (one padded 128-row tile) and a ragged batch (multi-step grid
    # whose last block overhangs -> exercises Pallas edge masking, no jnp.pad).
    for B, tm in ((8, 2048), (300, 128)):
        x = jax.random.normal(k_x, (B, T5_OUTPUT_DIM), dtype=jnp.float32)
        out = jax.block_until_ready(judge_text_apply(params_f32, x, tm=tm))
        ref = judge_text_ref(x, w1, b1, w2, b2)
        assert out.shape == (B, 1)
        assert jnp.allclose(out, ref, atol=1e-5, rtol=1e-5), "f32 mismatch vs reference"

    # bf16-streamed x (halves HBM bytes); accumulation and activations stay f32.
    B = 300
    params_bf16 = prepare_judge_text_params(w1, b1, w2, b2, compute_dtype=jnp.bfloat16)
    x32 = jax.random.normal(k_x, (B, T5_OUTPUT_DIM), dtype=jnp.float32)
    out_bf16 = jax.block_until_ready(
        judge_text_apply(params_bf16, x32.astype(jnp.bfloat16), tm=256))
    ref32 = judge_text_ref(x32, w1, b1, w2, b2)
    assert out_bf16.shape == (B, 1)
    assert jnp.allclose(out_bf16, ref32, atol=5e-3, rtol=5e-3), "bf16 mismatch vs reference"

    print("KERNEL_OK")
</pallas_src>

<mosaic_0001>
module attributes {stable_mosaic.version = 11 : i64} {
  func.func @judge_text_kernel(%arg0: i32, %arg1: memref<128x1024xf32, #tpu.memory_space<vmem>>, %arg2: memref<25x1024xf32, #tpu.memory_space<vmem>>, %arg3: memref<25x1xf32, #tpu.memory_space<vmem>>, %arg4: memref<25x1xf32, #tpu.memory_space<vmem>>, %arg5: memref<1xf32, #tpu.memory_space<smem>>, %arg6: memref<1x128xf32, #tpu.memory_space<vmem>>) attributes {dimension_semantics = [#tpu.dimension_semantics<parallel>], iteration_bounds = array<i64: 1>, scalar_prefetch = 0 : i64, scratch_operands = 0 : i64, tpu.core_type = #tpu.core_type<tc>, window_params = [{transform_indices = @transform_0, window_bounds = array<i64: 128, 1024>}, {pipeline_mode = #tpu.pipeline_mode<synchronous>, transform_indices = @transform_1, window_bounds = array<i64: 25, 1024>}, {pipeline_mode = #tpu.pipeline_mode<synchronous>, transform_indices = @transform_2, window_bounds = array<i64: 25, 1>}, {pipeline_mode = #tpu.pipeline_mode<synchronous>, transform_indices = @transform_3, window_bounds = array<i64: 25, 1>}, {transform_indices = @transform_4, window_bounds = array<i64: 1>}, {transform_indices = @transform_5, window_bounds = array<i64: 1, 128>}]} {
    %c0 = arith.constant 0 : index
    %c0_0 = arith.constant 0 : index
    %0 = vector.load %arg1[%c0, %c0_0] : memref<128x1024xf32, #tpu.memory_space<vmem>>, vector<128x1024xf32>
    %c0_1 = arith.constant 0 : index
    %c0_2 = arith.constant 0 : index
    %1 = vector.load %arg2[%c0_1, %c0_2] : memref<25x1024xf32, #tpu.memory_space<vmem>>, vector<25x1024xf32>
    %cst = arith.constant dense<0.000000e+00> : vector<25x128xf32>
    %2 = tpu.matmul %1, %0, %cst {dimension_numbers = #tpu.dot_dimension_numbers<[1], [1], [0], [0], [0, 0, 1, 0], [], []>} : vector<25x1024xf32>, vector<128x1024xf32>, vector<25x128xf32> -> vector<25x128xf32>
    %c0_3 = arith.constant 0 : index
    %c0_4 = arith.constant 0 : index
    %3 = vector.load %arg3[%c0_3, %c0_4] : memref<25x1xf32, #tpu.memory_space<vmem>>, vector<25x1xf32>
    %4 = vector.broadcast %3 : vector<25x1xf32> to vector<25x128xf32>
    %5 = arith.addf %2, %4 : vector<25x128xf32>
    %6 = arith.negf %5 : vector<25x128xf32>
    %7 = math.exp %6 : vector<25x128xf32>
    %cst_5 = arith.constant 1.000000e+00 : f32
    %8 = vector.broadcast %cst_5 : f32 to vector<25x128xf32>
    %9 = arith.addf %8, %7 : vector<25x128xf32>
    %10 = arith.divf %8, %9 : vector<25x128xf32>
    %c0_6 = arith.constant 0 : index
    %c0_7 = arith.constant 0 : index
    %11 = vector.load %arg4[%c0_6, %c0_7] : memref<25x1xf32, #tpu.memory_space<vmem>>, vector<25x1xf32>
    %12 = vector.broadcast %11 : vector<25x1xf32> to vector<25x128xf32>
    %13 = arith.mulf %10, %12 : vector<25x128xf32>
    %cst_8 = arith.constant dense<0.000000e+00> : vector<128xf32>
    %14 = vector.multi_reduction <add>, %13, %cst_8 [0] : vector<25x128xf32> to vector<128xf32>
    %15 = vector.shape_cast %14 : vector<128xf32> to vector<1x128xf32>
    %c0_9 = arith.constant 0 : index
    %16 = memref.load %arg5[%c0_9] : memref<1xf32, #tpu.memory_space<smem>>
    %17 = vector.broadcast %16 : f32 to vector<1x128xf32>
    %18 = arith.addf %15, %17 : vector<1x128xf32>
    %19 = arith.negf %18 : vector<1x128xf32>
    %20 = math.exp %19 : vector<1x128xf32>
    %cst_10 = arith.constant 1.000000e+00 : f32
    %21 = vector.broadcast %cst_10 : f32 to vector<1x128xf32>
    %22 = arith.addf %21, %20 : vector<1x128xf32>
    %23 = arith.divf %21, %22 : vector<1x128xf32>
    %c0_11 = arith.constant 0 : index
    %c0_12 = arith.constant 0 : index
    %24 = vector.load %arg6[%c0_11, %c0_12] : memref<1x128xf32, #tpu.memory_space<vmem>>, vector<1x128xf32>
    tpu.vector_store %arg6[%c0_11, %c0_12], %23 {strides = array<i32>} : memref<1x128xf32, #tpu.memory_space<vmem>>, vector<1x128xf32>,
    return
  }
  func.func @transform_0(%arg0: i32) -> (i32, i32) {
    %c0_i32 = arith.constant 0 : i32
    %c0_i32_0 = arith.constant 0 : i32
    return %arg0, %c0_i32 : i32, i32
  }
  func.func @transform_1(%arg0: i32) -> (i32, i32) {
    %c0_i32 = arith.constant 0 : i32
    %c0_i32_0 = arith.constant 0 : i32
    %c0_i32_1 = arith.constant 0 : i32
    return %c0_i32, %c0_i32_0 : i32, i32
  }
  func.func @transform_2(%arg0: i32) -> (i32, i32) {
    %c0_i32 = arith.constant 0 : i32
    %c0_i32_0 = arith.constant 0 : i32
    %c0_i32_1 = arith.constant 0 : i32
    return %c0_i32, %c0_i32_0 : i32, i32
  }
  func.func @transform_3(%arg0: i32) -> (i32, i32) {
    %c0_i32 = arith.constant 0 : i32
    %c0_i32_0 = arith.constant 0 : i32
    %c0_i32_1 = arith.constant 0 : i32
    return %c0_i32, %c0_i32_0 : i32, i32
  }
  func.func @transform_4(%arg0: i32) -> i32 {
    %c0_i32 = arith.constant 0 : i32
    %c0_i32_0 = arith.constant 0 : i32
    return %c0_i32 : i32
  }
  func.func @transform_5(%arg0: i32) -> (i32, i32) {
    %c0_i32 = arith.constant 0 : i32
    %c0_i32_0 = arith.constant 0 : i32
    return %c0_i32, %arg0 : i32, i32
  }
}

</mosaic_0001>

<llo_original>
// kernel: tpu_custom_call.1
$region0: #{tpu_custom_call.1}
  #allocation0 [shape = 'u32[]', space=smem, size = 0x4, offset = 0x4, fixed_abs, tag = 'smem constant byte address 0x4 - core index']
  #allocation1 [shape = 'u32[72,128]{1,0:T(1,128)}', space=vmem, size = 0x9000, scoped, tag = 'internal scratch']
  #allocation2 [shape = 'f32[1]{0:T(128)S(6)}', space=smem, size = 0x200, scoped, tag = 'scoped memory for tpu_custom_call.1']
  %s0 = inlined_call_operand.vmem [shape: f32[8,1024], index: 0, kind: input, shape index: {}]
  %s1 = inlined_call_operand.hbm [shape: f32[25,1024], index: 1, kind: input, shape index: {}]
  %s2 = inlined_call_operand.vmem [shape: f32[25,1], index: 2, kind: input, shape index: {}]
  %s3 = inlined_call_operand.vmem [shape: f32[25,1], index: 3, kind: input, shape index: {}]
  %s4 = inlined_call_operand.<no memory space> [shape: f32[1], index: 4, kind: input, shape index: {}]
  %s5 = inlined_call_operand.hbm [shape: f32[1,8], index: 5, kind: output, shape index: {}]
  %s6 = sld [smem:[#allocation0]]
  $region34: #{tpu_custom_call.1} parent=0
    _
  %s8 = ssub.s32 1, %s6
  %s9 = scalar_select 0, %s8, %s6
  %10 = sst [smem:[#allocation2]] %s4
  $region1: #{tpu_custom_call.1} parent=0
    #allocation3 [shape = 'u8[131072]{0}', space=vmem, size = 0x20000, scoped, tag = 'input window, operand 1, single buffered']
    #allocation4 [shape = 's32[1]{0}', space=sflag, size = 0x4, scoped, tag = 'scoped memory for tpu_custom_call.1']
    #allocation5 [shape = 's32[1]{0}', space=sflag, size = 0x4, scoped, tag = 'scoped memory for tpu_custom_call.1']
    #allocation6 [shape = 'u8[512]{0}', space=vmem, size = 0x400, scoped, tag = 'output window, operand 0, single buffered']
    %11 = vsyncpa [#allocation4], 0
    %12 = vsyncpa [#allocation5], 0
    // Predicated region
    $region2: #{tpu_custom_call.1} parent=1 // pred_check
      _
    $region3: #{tpu_custom_call.1} parent=1 // pred_check_branch
      %14 = sbr.rel (0) target = $region5
    $region4: #{tpu_custom_call.1} parent=1 // pred_region
      _
    $region5: #{tpu_custom_call.1} parent=1 // pred_fallthru
      _
    // Predicated region
    $region6: #{tpu_custom_call.1} parent=1 // pred_check
      _
    $region7: #{tpu_custom_call.1} parent=1 // pred_check_branch
      %16 = sbr.rel (0) target = $region9
    $region8: #{tpu_custom_call.1} parent=1 // pred_region
      %18 = vsyncadd [#allocation4], 0
      %s19 = sshll.u32 %s1, 4
      %s20 = int_to_ptr.hbm [resolvable:$true] %s19
      %s21 = sshll.u32 [#allocation3], 4
      %s22 = int_to_ptr.vmem [resolvable:$true] %s21
      %27 = dma.hbm_to_vmem [thread:$0]  %s20, 4096, %s22, [#allocation4], 1024, 1024, 64
    $region9: #{tpu_custom_call.1} parent=1 // pred_fallthru
      _
    // Predicated region
    $region10: #{tpu_custom_call.1} parent=1 // pred_check
      _
    $region11: #{tpu_custom_call.1} parent=1 // pred_check_branch
      %29 = sbr.rel (0) target = $region13
    $region12: #{tpu_custom_call.1} parent=1 // pred_region
      _
    $region13: #{tpu_custom_call.1} parent=1 // pred_fallthru
      _
    // Predicated region
    $region14: #{tpu_custom_call.1} parent=1 // pred_check
      _
    $region15: #{tpu_custom_call.1} parent=1 // pred_check_branch
      %31 = sbr.rel (0) target = $region17
    $region16: #{tpu_custom_call.1} parent=1 // pred_region
      _
    $region17: #{tpu_custom_call.1} parent=1 // pred_fallthru
      _
    // Predicated region
    $region18: #{tpu_custom_call.1} parent=1 // pred_check
      _
    $region19: #{tpu_custom_call.1} parent=1 // pred_check_branch
      %33 = sbr.rel (0) target = $region21
    $region20: #{tpu_custom_call.1} parent=1 // pred_region
      _
    $region21: #{tpu_custom_call.1} parent=1 // pred_fallthru
      _
    // Predicated region
    $region22: #{tpu_custom_call.1} parent=1 // pred_check
      _
    $region23: #{tpu_custom_call.1} parent=1 // pred_check_branch
      %35 = sbr.rel (0) target = $region25
    $region24: #{tpu_custom_call.1} parent=1 // pred_region
      %37 = dma.done [#allocation4], 4096
    $region25: #{tpu_custom_call.1} parent=1 // pred_fallthru
      _
    %v38 = vld [vmem:[%s0] sm:$0xff]
    %v39 = vld [vmem:[%s0 + $0x8] sm:$0xff]
    %v40 = vld [vmem:[%s0 + $0x10] sm:$0xff]
    %v41 = vld [vmem:[%s0 + $0x18] sm:$0xff]
    %v42 = vld [vmem:[%s0 + $0x20] sm:$0xff]
    %v43 = vld [vmem:[%s0 + $0x28] sm:$0xff]
    %v44 = vld [vmem:[%s0 + $0x30] sm:$0xff]
    %v45 = vld [vmem:[%s0 + $0x38] sm:$0xff]
    %v46 = vld [vmem:[%s0 + $0x40] sm:$0xff]
    %v47 = vld [vmem:[%s0 + $0x48] sm:$0xff]
    %v48 = vld [vmem:[%s0 + $0x50] sm:$0xff]
    %v49 = vld [vmem:[%s0 + $0x58] sm:$0xff]
    %v50 = vld [vmem:[%s0 + $0x60] sm:$0xff]
    %v51 = vld [vmem:[%s0 + $0x68] sm:$0xff]
    %v52 = vld [vmem:[%s0 + $0x70] sm:$0xff]
    %v53 = vld [vmem:[%s0 + $0x78] sm:$0xff]
    %v54 = vld [vmem:[%s0 + $0x80] sm:$0xff]
    %v55 = vld [vmem:[%s0 + $0x88] sm:$0xff]
    %v56 = vld [vmem:[%s0 + $0x90] sm:$0xff]
    %v57 = vld [vmem:[%s0 + $0x98] sm:$0xff]
    %v58 = vld [vmem:[%s0 + $0xa0] sm:$0xff]
    %v59 = vld [vmem:[%s0 + $0xa8] sm:$0xff]
    %v60 = vld [vmem:[%s0 + $0xb0] sm:$0xff]
    %v61 = vld [vmem:[%s0 + $0xb8] sm:$0xff]
    %v62 = vld [vmem:[%s0 + $0xc0] sm:$0xff]
    %v63 = vld [vmem:[%s0 + $0xc8] sm:$0xff]
    %v64 = vld [vmem:[%s0 + $0xd0] sm:$0xff]
    %v65 = vld [vmem:[%s0 + $0xd8] sm:$0xff]
    %v66 = vld [vmem:[%s0 + $0xe0] sm:$0xff]
    %v67 = vld [vmem:[%s0 + $0xe8] sm:$0xff]
    %v68 = vld [vmem:[%s0 + $0xf0] sm:$0xff]
    %v69 = vld [vmem:[%s0 + $0xf8] sm:$0xff]
    %v70 = vld [vmem:[%s0 + $0x100] sm:$0xff]
    %v71 = vld [vmem:[%s0 + $0x108] sm:$0xff]
    %v72 = vld [vmem:[%s0 + $0x110] sm:$0xff]
    %v73 = vld [vmem:[%s0 + $0x118] sm:$0xff]
    %v74 = vld [vmem:[%s0 + $0x120] sm:$0xff]
    %v75 = vld [vmem:[%s0 + $0x128] sm:$0xff]
    %v76 = vld [vmem:[%s0 + $0x130] sm:$0xff]
    %v77 = vld [vmem:[%s0 + $0x138] sm:$0xff]
    %v78 = vld [vmem:[%s0 + $0x140] sm:$0xff]
    %v79 = vld [vmem:[%s0 + $0x148] sm:$0xff]
    %v80 = vld [vmem:[%s0 + $0x150] sm:$0xff]
    %v81 = vld [vmem:[%s0 + $0x158] sm:$0xff]
    %v82 = vld [vmem:[%s0 + $0x160] sm:$0xff]
    %v83 = vld [vmem:[%s0 + $0x168] sm:$0xff]
    %v84 = vld [vmem:[%s0 + $0x170] sm:$0xff]
    %v85 = vld [vmem:[%s0 + $0x178] sm:$0xff]
    %v86 = vld [vmem:[%s0 + $0x180] sm:$0xff]
    %v87 = vld [vmem:[%s0 + $0x188] sm:$0xff]
    %v88 = vld [vmem:[%s0 + $0x190] sm:$0xff]
    %v89 = vld [vmem:[%s0 + $0x198] sm:$0xff]
    %v90 = vld [vmem:[%s0 + $0x1a0] sm:$0xff]
    %v91 = vld [vmem:[%s0 + $0x1a8] sm:$0xff]
    %v92 = vld [vmem:[%s0 + $0x1b0] sm:$0xff]
    %v93 = vld [vmem:[%s0 + $0x1b8] sm:$0xff]
    %v94 = vld [vmem:[%s0 + $0x1c0] sm:$0xff]
    %v95 = vld [vmem:[%s0 + $0x1c8] sm:$0xff]
    %v96 = vld [vmem:[%s0 + $0x1d0] sm:$0xff]
    %v97 = vld [vmem:[%s0 + $0x1d8] sm:$0xff]
    %v98 = vld [vmem:[%s0 + $0x1e0] sm:$0xff]
    %v99 = vld [vmem:[%s0 + $0x1e8] sm:$0xff]
    %v100 = vld [vmem:[%s0 + $0x1f0] sm:$0xff]
    %v101 = vld [vmem:[%s0 + $0x1f8] sm:$0xff]
    %v102 = vld [vmem:[%s0 + $0x200] sm:$0xff]
    %v103 = vld [vmem:[%s0 + $0x208] sm:$0xff]
    %v104 = vld [vmem:[%s0 + $0x210] sm:$0xff]
    %v105 = vld [vmem:[%s0 + $0x218] sm:$0xff]
    %v106 = vld [vmem:[%s0 + $0x220] sm:$0xff]
    %v107 = vld [vmem:[%s0 + $0x228] sm:$0xff]
    %v108 = vld [vmem:[%s0 + $0x230] sm:$0xff]
    %v109 = vld [vmem:[%s0 + $0x238] sm:$0xff]
    %v110 = vld [vmem:[%s0 + $0x240] sm:$0xff]
    %v111 = vld [vmem:[%s0 + $0x248] sm:$0xff]
    %v112 = vld [vmem:[%s0 + $0x250] sm:$0xff]
    %v113 = vld [vmem:[%s0 + $0x258] sm:$0xff]
    %v114 = vld [vmem:[%s0 + $0x260] sm:$0xff]
    %v115 = vld [vmem:[%s0 + $0x268] sm:$0xff]
    %v116 = vld [vmem:[%s0 + $0x270] sm:$0xff]
    %v117 = vld [vmem:[%s0 + $0x278] sm:$0xff]
    %v118 = vld [vmem:[%s0 + $0x280] sm:$0xff]
    %v119 = vld [vmem:[%s0 + $0x288] sm:$0xff]
    %v120 = vld [vmem:[%s0 + $0x290] sm:$0xff]
    %v121 = vld [vmem:[%s0 + $0x298] sm:$0xff]
    %v122 = vld [vmem:[%s0 + $0x2a0] sm:$0xff]
    %v123 = vld [vmem:[%s0 + $0x2a8] sm:$0xff]
    %v124 = vld [vmem:[%s0 + $0x2b0] sm:$0xff]
    %v125 = vld [vmem:[%s0 + $0x2b8] sm:$0xff]
    %v126 = vld [vmem:[%s0 + $0x2c0] sm:$0xff]
    %v127 = vld [vmem:[%s0 + $0x2c8] sm:$0xff]
    %v128 = vld [vmem:[%s0 + $0x2d0] sm:$0xff]
    %v129 = vld [vmem:[%s0 + $0x2d8] sm:$0xff]
    %v130 = vld [vmem:[%s0 + $0x2e0] sm:$0xff]
    %v131 = vld [vmem:[%s0 + $0x2e8] sm:$0xff]
    %v132 = vld [vmem:[%s0 + $0x2f0] sm:$0xff]
    %v133 = vld [vmem:[%s0 + $0x2f8] sm:$0xff]
    %v134 = vld [vmem:[%s0 + $0x300] sm:$0xff]
    %v135 = vld [vmem:[%s0 + $0x308] sm:$0xff]
    %v136 = vld [vmem:[%s0 + $0x310] sm:$0xff]
    %v137 = vld [vmem:[%s0 + $0x318] sm:$0xff]
    %v138 = vld [vmem:[%s0 + $0x320] sm:$0xff]
    %v139 = vld [vmem:[%s0 + $0x328] sm:$0xff]
    %v140 = vld [vmem:[%s0 + $0x330] sm:$0xff]
    %v141 = vld [vmem:[%s0 + $0x338] sm:$0xff]
    %v142 = vld [vmem:[%s0 + $0x340] sm:$0xff]
    %v143 = vld [vmem:[%s0 + $0x348] sm:$0xff]
    %v144 = vld [vmem:[%s0 + $0x350] sm:$0xff]
    %v145 = vld [vmem:[%s0 + $0x358] sm:$0xff]
    %v146 = vld [vmem:[%s0 + $0x360] sm:$0xff]
    %v147 = vld [vmem:[%s0 + $0x368] sm:$0xff]
    %v148 = vld [vmem:[%s0 + $0x370] sm:$0xff]
    %v149 = vld [vmem:[%s0 + $0x378] sm:$0xff]
    %v150 = vld [vmem:[%s0 + $0x380] sm:$0xff]
    %v151 = vld [vmem:[%s0 + $0x388] sm:$0xff]
    %v152 = vld [vmem:[%s0 + $0x390] sm:$0xff]
    %v153 = vld [vmem:[%s0 + $0x398] sm:$0xff]
    %v154 = vld [vmem:[%s0 + $0x3a0] sm:$0xff]
    %v155 = vld [vmem:[%s0 + $0x3a8] sm:$0xff]
    %v156 = vld [vmem:[%s0 + $0x3b0] sm:$0xff]
    %v157 = vld [vmem:[%s0 + $0x3b8] sm:$0xff]
    %v158 = vld [vmem:[%s0 + $0x3c0] sm:$0xff]
    %v159 = vld [vmem:[%s0 + $0x3c8] sm:$0xff]
    %v160 = vld [vmem:[%s0 + $0x3d0] sm:$0xff]
    %v161 = vld [vmem:[%s0 + $0x3d8] sm:$0xff]
    %v162 = vld [vmem:[%s0 + $0x3e0] sm:$0xff]
    %v163 = vld [vmem:[%s0 + $0x3e8] sm:$0xff]
    %v164 = vld [vmem:[%s0 + $0x3f0] sm:$0xff]
    %v165 = vld [vmem:[%s0 + $0x3f8] sm:$0xff]
    %v166 = vld [vmem:[#allocation3] sm:$0xff]
    %v167 = vld [vmem:[#allocation3 + $0x8] sm:$0xff]
    %v168 = vld [vmem:[#allocation3 + $0x10] sm:$0xff]
    %v169 = vld [vmem:[#allocation3 + $0x18] sm:$0xff]
    %v170 = vld [vmem:[#allocation3 + $0x20] sm:$0xff]
    %v171 = vld [vmem:[#allocation3 + $0x28] sm:$0xff]
    %v172 = vld [vmem:[#allocation3 + $0x30] sm:$0xff]
    %v173 = vld [vmem:[#allocation3 + $0x38] sm:$0xff]
    %v174 = vld [vmem:[#allocation3 + $0x40] sm:$0xff]
    %v175 = vld [vmem:[#allocation3 + $0x48] sm:$0xff]
    %v176 = vld [vmem:[#allocation3 + $0x50] sm:$0xff]
    %v177 = vld [vmem:[#allocation3 + $0x58] sm:$0xff]
    %v178 = vld [vmem:[#allocation3 + $0x60] sm:$0xff]
    %v179 = vld [vmem:[#allocation3 + $0x68] sm:$0xff]
    %v180 = vld [vmem:[#allocation3 + $0x70] sm:$0xff]
    %v181 = vld [vmem:[#allocation3 + $0x78] sm:$0xff]
    %v182 = vld [vmem:[#allocation3 + $0x80] sm:$0xff]
    %v183 = vld [vmem:[#allocation3 + $0x88] sm:$0xff]
    %v184 = vld [vmem:[#allocation3 + $0x90] sm:$0xff]
    %v185 = vld [vmem:[#allocation3 + $0x98] sm:$0xff]
    %v186 = vld [vmem:[#allocation3 + $0xa0] sm:$0xff]
    %v187 = vld [vmem:[#allocation3 + $0xa8] sm:$0xff]
    %v188 = vld [vmem:[#allocation3 + $0xb0] sm:$0xff]
    %v189 = vld [vmem:[#allocation3 + $0xb8] sm:$0xff]
    %v190 = vld [vmem:[#allocation3 + $0xc0] sm:$0x1]
    %v191 = vld [vmem:[#allocation3 + $0xc8] sm:$0x1]
    %v192 = vld [vmem:[#allocation3 + $0xd0] sm:$0x1]
    %v193 = vld [vmem:[#allocation3 + $0xd8] sm:$0x1]
    %v194 = vld [vmem:[#allocation3 + $0xe0] sm:$0x1]
    %v195 = vld [vmem:[#allocation3 + $0xe8] sm:$0x1]
    %v196 = vld [vmem:[#allocation3 + $0xf0] sm:$0x1]
    %v197 = vld [vmem:[#allocation3 + $0xf8] sm:$0x1]
    %v198 = vld [vmem:[%s2] sm:$0xff]
    %v199 = vld [vmem:[%s2 + $0x8] sm:$0xff]
    %v200 = vld [vmem:[%s2 + $0x10] sm:$0xff]
    %v201 = vld [vmem:[%s2 + $0x18] sm:$0x1]
    %203 = vset.pattern.permute.xlu0 0
    %204 = vperm.xlu0 %203, %v198
    %v205 = vpop.permute.xlu0 %204
    %208 = vset.pattern.permute.xlu0 0
    %209 = vperm.xlu0 %208, %v199
    %v210 = vpop.permute.xlu0 %209
    %213 = vset.pattern.permute.xlu0 0
    %214 = vperm.xlu0 %213, %v200
    %v215 = vpop.permute.xlu0 %214
    %218 = vset.pattern.permute.xlu0 0
    %219 = vperm.xlu0 %218, %v201
    %v220 = vpop.permute.xlu0 %219
    %222 = vmatpush.xpose.msra.mxu0 %v158
    %223 = vmatpush.xpose.msra.mxu0 %v150
    %224 = vmatpush.xpose.msra.mxu0 %v142
    %225 = vmatpush.xpose.msra.mxu0 %v134
    %226 = vmatpush.xpose.msra.mxu0 %v126
    %227 = vmatpush.xpose.msra.mxu0 %v118
    %228 = vmatpush.xpose.msra.mxu0 %v110
    %229 = vmatpush.xpose.msra.mxu0 %v102
    %230 = vmatpush.xpose.msra.mxu0 %v94
    %231 = vmatpush.xpose.msra.mxu0 %v86
    %232 = vmatpush.xpose.msra.mxu0 %v78
    %233 = vmatpush.xpose.msra.mxu0 %v70
    %234 = vmatpush.xpose.msra.mxu0 %v62
    %235 = vmatpush.xpose.msra.mxu0 %v54
    %236 = vmatpush.xpose.msra.mxu0 %v46
    %237 = vmatpush.xpose.msra.mxu0 %v38
    %238 = vmatmul.f32.gmra.mxu0 %v166
    %v239 = vpop.f32.mrf.mxu0
    %v240 = vadd.f32 %v205, %v239
    %241 = vmatmul.f32.gmra.mxu0 %v174
    %v242 = vpop.f32.mrf.mxu0
    %v243 = vadd.f32 %v210, %v242
    %244 = vmatmul.f32.gmra.mxu0 %v182
    %v245 = vpop.f32.mrf.mxu0
    %v246 = vadd.f32 %v215, %v245
    %247 = vmatmul.f32.gmra.mxu0 %v190
    %v248 = vpop.f32.mrf.mxu0
    %v249 = vadd.f32 %v220, %v248
    %250 = vdwg.mxu0
    %251 = vmatpush.xpose.msra.mxu0 %v159
    %252 = vmatpush.xpose.msra.mxu0 %v151
    %253 = vmatpush.xpose.msra.mxu0 %v143
    %254 = vmatpush.xpose.msra.mxu0 %v135
    %255 = vmatpush.xpose.msra.mxu0 %v127
    %256 = vmatpush.xpose.msra.mxu0 %v119
    %257 = vmatpush.xpose.msra.mxu0 %v111
    %258 = vmatpush.xpose.msra.mxu0 %v103
    %259 = vmatpush.xpose.msra.mxu0 %v95
    %260 = vmatpush.xpose.msra.mxu0 %v87
    %261 = vmatpush.xpose.msra.mxu0 %v79
    %262 = vmatpush.xpose.msra.mxu0 %v71
    %263 = vmatpush.xpose.msra.mxu0 %v63
    %264 = vmatpush.xpose.msra.mxu0 %v55
    %265 = vmatpush.xpose.msra.mxu0 %v47
    %266 = vmatpush.xpose.msra.mxu0 %v39
    %267 = vmatmul.f32.gmra.mxu0 %v167
    %v268 = vpop.f32.mrf.mxu0
    %v269 = vadd.f32 %v240, %v268
    %270 = vmatmul.f32.gmra.mxu0 %v175
    %v271 = vpop.f32.mrf.mxu0
    %v272 = vadd.f32 %v243, %v271
    %273 = vmatmul.f32.gmra.mxu0 %v183
    %v274 = vpop.f32.mrf.mxu0
    %v275 = vadd.f32 %v246, %v274
    %276 = vmatmul.f32.gmra.mxu0 %v191
    %v277 = vpop.f32.mrf.mxu0
    %v278 = vadd.f32 %v249, %v277
    %279 = vdwg.mxu0
    %280 = vmatpush.xpose.msra.mxu0 %v160
    %281 = vmatpush.xpose.msra.mxu0 %v152
    %282 = vmatpush.xpose.msra.mxu0 %v144
    %283 = vmatpush.xpose.msra.mxu0 %v136
    %284 = vmatpush.xpose.msra.mxu0 %v128
    %285 = vmatpush.xpose.msra.mxu0 %v120
    %286 = vmatpush.xpose.msra.mxu0 %v112
    %287 = vmatpush.xpose.msra.mxu0 %v104
    %288 = vmatpush.xpose.msra.mxu0 %v96
    %289 = vmatpush.xpose.msra.mxu0 %v88
    %290 = vmatpush.xpose.msra.mxu0 %v80
    %291 = vmatpush.xpose.msra.mxu0 %v72
    %292 = vmatpush.xpose.msra.mxu0 %v64
    %293 = vmatpush.xpose.msra.mxu0 %v56
    %294 = vmatpush.xpose.msra.mxu0 %v48
    %295 = vmatpush.xpose.msra.mxu0 %v40
    %296 = vmatmul.f32.gmra.mxu0 %v168
    %v297 = vpop.f32.mrf.mxu0
    %v298 = vadd.f32 %v269, %v297
    %299 = vmatmul.f32.gmra.mxu0 %v176
    %v300 = vpop.f32.mrf.mxu0
    %v301 = vadd.f32 %v272, %v300
    %302 = vmatmul.f32.gmra.mxu0 %v184
    %v303 = vpop.f32.mrf.mxu0
    %v304 = vadd.f32 %v275, %v303
    %305 = vmatmul.f32.gmra.mxu0 %v192
    %v306 = vpop.f32.mrf.mxu0
    %v307 = vadd.f32 %v278, %v306
    %308 = vdwg.mxu0
    %309 = vmatpush.xpose.msra.mxu0 %v161
    %310 = vmatpush.xpose.msra.mxu0 %v153
    %311 = vmatpush.xpose.msra.mxu0 %v145
    %312 = vmatpush.xpose.msra.mxu0 %v137
    %313 = vmatpush.xpose.msra.mxu0 %v129
    %314 = vmatpush.xpose.msra.mxu0 %v121
    %315 = vmatpush.xpose.msra.mxu0 %v113
    %316 = vmatpush.xpose.msra.mxu0 %v105
    %317 = vmatpush.xpose.msra.mxu0 %v97
    %318 = vmatpush.xpose.msra.mxu0 %v89
    %319 = vmatpush.xpose.msra.mxu0 %v81
    %320 = vmatpush.xpose.msra.mxu0 %v73
    %321 = vmatpush.xpose.msra.mxu0 %v65
    %322 = vmatpush.xpose.msra.mxu0 %v57
    %323 = vmatpush.xpose.msra.mxu0 %v49
    %324 = vmatpush.xpose.msra.mxu0 %v41
    %325 = vmatmul.f32.gmra.mxu0 %v169
    %v326 = vpop.f32.mrf.mxu0
    %v327 = vadd.f32 %v298, %v326
    %328 = vmatmul.f32.gmra.mxu0 %v177
    %v329 = vpop.f32.mrf.mxu0
    %v330 = vadd.f32 %v301, %v329
    %331 = vmatmul.f32.gmra.mxu0 %v185
    %v332 = vpop.f32.mrf.mxu0
    %v333 = vadd.f32 %v304, %v332
    %334 = vmatmul.f32.gmra.mxu0 %v193
    %v335 = vpop.f32.mrf.mxu0
    %v336 = vadd.f32 %v307, %v335
    %337 = vdwg.mxu0
    %338 = vmatpush.xpose.msra.mxu0 %v162
    %339 = vmatpush.xpose.msra.mxu0 %v154
    %340 = vmatpush.xpose.msra.mxu0 %v146
    %341 = vmatpush.xpose.msra.mxu0 %v138
    %342 = vmatpush.xpose.msra.mxu0 %v130
    %343 = vmatpush.xpose.msra.mxu0 %v122
    %344 = vmatpush.xpose.msra.mxu0 %v114
    %345 = vmatpush.xpose.msra.mxu0 %v106
    %346 = vmatpush.xpose.msra.mxu0 %v98
    %347 = vmatpush.xpose.msra.mxu0 %v90
    %348 = vmatpush.xpose.msra.mxu0 %v82
    %349 = vmatpush.xpose.msra.mxu0 %v74
    %350 = vmatpush.xpose.msra.mxu0 %v66
    %351 = vmatpush.xpose.msra.mxu0 %v58
    %352 = vmatpush.xpose.msra.mxu0 %v50
    %353 = vmatpush.xpose.msra.mxu0 %v42
    %354 = vmatmul.f32.gmra.mxu0 %v170
    %v355 = vpop.f32.mrf.mxu0
    %v356 = vadd.f32 %v327, %v355
    %357 = vmatmul.f32.gmra.mxu0 %v178
    %v358 = vpop.f32.mrf.mxu0
    %v359 = vadd.f32 %v330, %v358
    %360 = vmatmul.f32.gmra.mxu0 %v186
    %v361 = vpop.f32.mrf.mxu0
    %v362 = vadd.f32 %v333, %v361
    %363 = vmatmul.f32.gmra.mxu0 %v194
    %v364 = vpop.f32.mrf.mxu0
    %v365 = vadd.f32 %v336, %v364
    %366 = vdwg.mxu0
    %367 = vmatpush.xpose.msra.mxu0 %v163
    %368 = vmatpush.xpose.msra.mxu0 %v155
    %369 = vmatpush.xpose.msra.mxu0 %v147
    %370 = vmatpush.xpose.msra.mxu0 %v139
    %371 = vmatpush.xpose.msra.mxu0 %v131
    %372 = vmatpush.xpose.msra.mxu0 %v123
    %373 = vmatpush.xpose.msra.mxu0 %v115
    %374 = vmatpush.xpose.msra.mxu0 %v107
    %375 = vmatpush.xpose.msra.mxu0 %v99
    %376 = vmatpush.xpose.msra.mxu0 %v91
    %377 = vmatpush.xpose.msra.mxu0 %v83
    %378 = vmatpush.xpose.msra.mxu0 %v75
    %379 = vmatpush.xpose.msra.mxu0 %v67
    %380 = vmatpush.xpose.msra.mxu0 %v59
    %381 = vmatpush.xpose.msra.mxu0 %v51
    %382 = vmatpush.xpose.msra.mxu0 %v43
    %383 = vmatmul.f32.gmra.mxu0 %v171
    %v384 = vpop.f32.mrf.mxu0
    %v385 = vadd.f32 %v356, %v384
    %386 = vmatmul.f32.gmra.mxu0 %v179
    %v387 = vpop.f32.mrf.mxu0
    %v388 = vadd.f32 %v359, %v387
    %389 = vmatmul.f32.gmra.mxu0 %v187
    %v390 = vpop.f32.mrf.mxu0
    %v391 = vadd.f32 %v362, %v390
    %392 = vmatmul.f32.gmra.mxu0 %v195
    %v393 = vpop.f32.mrf.mxu0
    %v394 = vadd.f32 %v365, %v393
    %395 = vdwg.mxu0
    %396 = vmatpush.xpose.msra.mxu0 %v164
    %397 = vmatpush.xpose.msra.mxu0 %v156
    %398 = vmatpush.xpose.msra.mxu0 %v148
    %399 = vmatpush.xpose.msra.mxu0 %v140
    %400 = vmatpush.xpose.msra.mxu0 %v132
    %401 = vmatpush.xpose.msra.mxu0 %v124
    %402 = vmatpush.xpose.msra.mxu0 %v116
    %403 = vmatpush.xpose.msra.mxu0 %v108
    %404 = vmatpush.xpose.msra.mxu0 %v100
    %405 = vmatpush.xpose.msra.mxu0 %v92
    %406 = vmatpush.xpose.msra.mxu0 %v84
    %407 = vmatpush.xpose.msra.mxu0 %v76
    %408 = vmatpush.xpose.msra.mxu0 %v68
    %409 = vmatpush.xpose.msra.mxu0 %v60
    %410 = vmatpush.xpose.msra.mxu0 %v52
    %411 = vmatpush.xpose.msra.mxu0 %v44
    %412 = vmatmul.f32.gmra.mxu0 %v172
    %v413 = vpop.f32.mrf.mxu0
    %v414 = vadd.f32 %v385, %v413
    %415 = vmatmul.f32.gmra.mxu0 %v180
    %v416 = vpop.f32.mrf.mxu0
    %v417 = vadd.f32 %v388, %v416
    %418 = vmatmul.f32.gmra.mxu0 %v188
    %v419 = vpop.f32.mrf.mxu0
    %v420 = vadd.f32 %v391, %v419
    %421 = vmatmul.f32.gmra.mxu0 %v196
    %v422 = vpop.f32.mrf.mxu0
    %v423 = vadd.f32 %v394, %v422
    %424 = vdwg.mxu0
    %425 = vmatpush.xpose.msra.mxu0 %v165
    %426 = vmatpush.xpose.msra.mxu0 %v157
    %427 = vmatpush.xpose.msra.mxu0 %v149
    %428 = vmatpush.xpose.msra.mxu0 %v141
    %429 = vmatpush.xpose.msra.mxu0 %v133
    %430 = vmatpush.xpose.msra.mxu0 %v125
    %431 = vmatpush.xpose.msra.mxu0 %v117
    %432 = vmatpush.xpose.msra.mxu0 %v109
    %433 = vmatpush.xpose.msra.mxu0 %v101
    %434 = vmatpush.xpose.msra.mxu0 %v93
    %435 = vmatpush.xpose.msra.mxu0 %v85
    %436 = vmatpush.xpose.msra.mxu0 %v77
    %437 = vmatpush.xpose.msra.mxu0 %v69
    %438 = vmatpush.xpose.msra.mxu0 %v61
    %439 = vmatpush.xpose.msra.mxu0 %v53
    %440 = vmatpush.xpose.msra.mxu0 %v45
    %441 = vmatmul.f32.gmra.mxu0 %v173
    %v442 = vpop.f32.mrf.mxu0
    %v443 = vadd.f32 %v414, %v442
    %444 = vmatmul.f32.gmra.mxu0 %v181
    %v445 = vpop.f32.mrf.mxu0
    %v446 = vadd.f32 %v417, %v445
    %447 = vmatmul.f32.gmra.mxu0 %v189
    %v448 = vpop.f32.mrf.mxu0
    %v449 = vadd.f32 %v420, %v448
    %450 = vmatmul.f32.gmra.mxu0 %v197
    %v451 = vpop.f32.mrf.mxu0
    %v452 = vadd.f32 %v423, %v451
    %453 = vdwg.mxu0
    %v454 = vxor.u32 %v443, 2147483648
    %v455 = vxor.u32 %v446, 2147483648
    %v456 = vxor.u32 %v449, 2147483648
    %v457 = vxor.u32 %v452, 2147483648
    %v458 = vmul.f32 %v454, 1.442695
    %v459 = vpow.pop %v458
    %v460 = vmul.f32 %v455, 1.442695
    %v461 = vpow.pop %v460
    %v462 = vmul.f32 %v456, 1.442695
    %v463 = vpow.pop %v462
    %v464 = vmul.f32 %v457, 1.442695
    %v465 = vpow.pop %v464
    %v466 = vadd.f32 %v459, 1.0
    %v467 = vadd.f32 %v461, 1.0
    %v468 = vadd.f32 %v463, 1.0
    %v469 = vadd.f32 %v465, 1.0
    %v470 = vrcp.pop %v466
    %v471 = vmul.f32 %v466, %v470
    %v472 = vsub.f32 1.0, %v471
    %v473 = vmul.f32 %v470, %v472
    %v474 = vadd.f32 %v470, %v473
    %vm475 = vweird.f32 %v466
    %vm476 = vweird.f32 %v470
    %vm477 = vmor %vm475, %vm476
    %v478 = vsel %vm477, %v470, %v474
    %v479 = vand.u32 2147483647, %v466
    %vm480 = vcmp.eq.f32.partialorder %v479, 8.507059e+37
    %v481 = vand.u32 %v466, 2147483648
    %v482 = vor.u32 1.1754944e-38, %v481
    %v483 = vsel %vm480, %v482, %v478
    %v484 = vmul.f32 1.0, %v483
    %v485 = vrcp.pop %v467
    %v486 = vmul.f32 %v467, %v485
    %v487 = vsub.f32 1.0, %v486
    %v488 = vmul.f32 %v485, %v487
    %v489 = vadd.f32 %v485, %v488
    %vm490 = vweird.f32 %v467
    %vm491 = vweird.f32 %v485
    %vm492 = vmor %vm490, %vm491
    %v493 = vsel %vm492, %v485, %v489
    %v494 = vand.u32 2147483647, %v467
    %vm495 = vcmp.eq.f32.partialorder %v494, 8.507059e+37
    %v496 = vand.u32 %v467, 2147483648
    %v497 = vor.u32 1.1754944e-38, %v496
    %v498 = vsel %vm495, %v497, %v493
    %v499 = vmul.f32 1.0, %v498
    %v500 = vrcp.pop %v468
    %v501 = vmul.f32 %v468, %v500
    %v502 = vsub.f32 1.0, %v501
    %v503 = vmul.f32 %v500, %v502
    %v504 = vadd.f32 %v500, %v503
    %vm505 = vweird.f32 %v468
    %vm506 = vweird.f32 %v500
    %vm507 = vmor %vm505, %vm506
    %v508 = vsel %vm507, %v500, %v504
    %v509 = vand.u32 2147483647, %v468
    %vm510 = vcmp.eq.f32.partialorder %v509, 8.507059e+37
    %v511 = vand.u32 %v468, 2147483648
    %v512 = vor.u32 1.1754944e-38, %v511
    %v513 = vsel %vm510, %v512, %v508
    %v514 = vmul.f32 1.0, %v513
    %v515 = vrcp.pop %v469
    %v516 = vmul.f32 %v469, %v515
    %v517 = vsub.f32 1.0, %v516
    %v518 = vmul.f32 %v515, %v517
    %v519 = vadd.f32 %v515, %v518
    %vm520 = vweird.f32 %v469
    %vm521 = vweird.f32 %v515
    %vm522 = vmor %vm520, %vm521
    %v523 = vsel %vm522, %v515, %v519
    %v524 = vand.u32 2147483647, %v469
    %vm525 = vcmp.eq.f32.partialorder %v524, 8.507059e+37
    %v526 = vand.u32 %v469, 2147483648
    %v527 = vor.u32 1.1754944e-38, %v526
    %v528 = vsel %vm525, %v527, %v523
    %v529 = vmul.f32 1.0, %v528
    %v530 = vld [vmem:[%s3] sm:$0xff]
    %v531 = vld [vmem:[%s3 + $0x8] sm:$0xff]
    %v532 = vld [vmem:[%s3 + $0x10] sm:$0xff]
    %v533 = vld [vmem:[%s3 + $0x18] sm:$0x1]
    %535 = vset.pattern.permute.xlu0 0
    %536 = vperm.xlu0 %535, %v530
    %v537 = vpop.permute.xlu0 %536
    %540 = vset.pattern.permute.xlu0 0
    %541 = vperm.xlu0 %540, %v531
    %v542 = vpop.permute.xlu0 %541
    %545 = vset.pattern.permute.xlu0 0
    %546 = vperm.xlu0 %545, %v532
    %v547 = vpop.permute.xlu0 %546
    %550 = vset.pattern.permute.xlu0 0
    %551 = vperm.xlu0 %550, %v533
    %v552 = vpop.permute.xlu0 %551
    %v554 = vmul.f32 %v484, %v537
    %v555 = vmul.f32 %v499, %v542
    %v556 = vmul.f32 %v514, %v547
    %v557 = vmul.f32 %v529, %v552
    %v558 = vadd.f32 %v554, %v555
    %v559 = vadd.f32 %v558, %v556
    %vm560 = vcmask 1040384
    %v561 = vsel %vm560, %v557, 0.0
    %v562 = vadd.f32 %v559, %v561
    %v563 = vrot.slane %v562, 4
    %v564 = vadd.f32 %v562, %v563
    %v565 = vrot.slane %v564, 2
    %v566 = vadd.f32 %v564, %v565
    %v567 = vrot.slane %v566, 1
    %v568 = vadd.f32 %v566, %v567
    %s569 = sld [smem:[#allocation2]]
    %v570 = vstv %s569
    %v571 = vadd.f32 %v568, %v570
    %v572 = vxor.u32 %v571, 2147483648
    %v573 = vmul.f32 %v572, 1.442695
    %v574 = vpow.pop %v573
    %v575 = vadd.f32 %v574, 1.0
    %v576 = vrcp.pop %v575
    %v577 = vmul.f32 %v575, %v576
    %v578 = vsub.f32 1.0, %v577
    %v579 = vmul.f32 %v576, %v578
    %v580 = vadd.f32 %v576, %v579
    %vm581 = vweird.f32 %v575
    %vm582 = vweird.f32 %v576
    %vm583 = vmor %vm581, %vm582
    %v584 = vsel %vm583, %v576, %v580
    %v585 = vand.u32 2147483647, %v575
    %vm586 = vcmp.eq.f32.partialorder %v585, 8.507059e+37
    %v587 = vand.u32 %v575, 2147483648
    %v588 = vor.u32 1.1754944e-38, %v587
    %v589 = vsel %vm586, %v588, %v584
    %v590 = vmul.f32 1.0, %v589
    %591 = vst [vmem:[#allocation6] sm:$0x1] %v590
    // Predicated region
    $region26: #{tpu_custom_call.1} parent=1 // pred_check
      _
    $region27: #{tpu_custom_call.1} parent=1 // pred_check_branch
      %593 = sbr.rel (0) target = $region29
    $region28: #{tpu_custom_call.1} parent=1 // pred_region
      %595 = vsyncadd [#allocation5], 0
      %s597 = sshll.u32 [#allocation6], 4
      %s598 = int_to_ptr.vmem [resolvable:$true] %s597
      %s599 = sshll.u32 %s5, 4
      %s600 = int_to_ptr.hbm [resolvable:$true] %s599
      %602 = dma.vmem_to_hbm [thread:$0]  %s598, 16, %s600, [#allocation5]
    $region29: #{tpu_custom_call.1} parent=1 // pred_fallthru
      _
    // Predicated region
    $region30: #{tpu_custom_call.1} parent=1 // pred_check
      _
    $region31: #{tpu_custom_call.1} parent=1 // pred_check_branch
      %604 = sbr.rel (0) target = $region33
    $region32: #{tpu_custom_call.1} parent=1 // pred_region
      %606 = dma.done [#allocation5], 16
    $region33: #{tpu_custom_call.1} parent=1 // pred_fallthru
      _
    %607 = vsyncpa [#allocation4], 1
    %608 = vsyncpa [#allocation5], 1

</llo_original>
